<compile_context>
chip_gen: v7x
topology: tpu7x:2x2x1
jax: 0.10.0
libtpu: 0.0.40
codegen_flags: <defaults>
</compile_context>

<pallas_src>
import jax
import jax.numpy as jnp
from jax import lax
from jax.experimental import pallas as pl
from jax.experimental.pallas import tpu as pltpu


def encoder_rnn_kernel(ids_ref, emb_ref, wih_ref, whh_ref, bih_ref, bhh_ref,
                       out_ref, hn_ref, gi_scr, h_scr):
    """Embedding lookup + GRU recurrence, all inside the kernel.

    ids_ref : VMEM (T*B, 1) int32   time-major flattened token ids
    emb_ref : VMEM (V, H)    f32    embedding table
    wih_ref : VMEM (H, 3H)   f32    packed input-hidden weights [r | z | n]
    whh_ref : VMEM (H, 3H)   f32    packed hidden-hidden weights [r | z | n]
    bih_ref : VMEM (1, 3H)   f32
    bhh_ref : VMEM (1, 3H)   f32
    out_ref : VMEM (T, B, H) f32    time-major sequence output
    hn_ref  : VMEM (1, B, H) f32    final hidden state
    gi_scr  : VMEM (T*B, 3H) f32    hoisted input projections for all steps
    h_scr   : VMEM (B, H)    f32    running hidden state
    """
    TB = ids_ref.shape[0]
    V, H = emb_ref.shape
    T, B, _ = out_ref.shape

    # ---- Hoisted embedding lookup: one-hot(ids) @ emb on the MXU ------------
    # (exact: 0/1 rows select embedding rows; OOB ids give all-zero rows)
    onehot = (ids_ref[...] ==
              lax.broadcasted_iota(jnp.int32, (TB, V), 1)).astype(jnp.float32)
    x_all = jnp.dot(onehot, emb_ref[...],
                    preferred_element_type=jnp.float32)            # (T*B, H)

    # ---- dropout: identity (eval semantics, see TODO above) -----------------

    # ---- Hoisted input projections for ALL timesteps in one matmul ----------
    gi_scr[...] = (jnp.dot(x_all, wih_ref[...],
                           preferred_element_type=jnp.float32)
                   + bih_ref[...])                                  # (T*B, 3H)

    # ---- Loop-invariant weights/biases loaded once ---------------------------
    w_hh = whh_ref[...]                                             # (H, 3H)
    b_hh = bhh_ref[...]                                             # (1, 3H)

    # h_0 = zeros (PyTorch default when no initial hidden is given).
    h_scr[...] = jnp.zeros_like(h_scr)

    # ---- Serial GRU recurrence: only the h-dependent matmul per step --------
    @pl.loop(0, T)
    def _(t):
        h_prev = h_scr[...]                                         # (B, H)
        gi = gi_scr[pl.ds(t * B, B), :]                             # (B, 3H)
        gh = (jnp.dot(h_prev, w_hh, preferred_element_type=jnp.float32)
              + b_hh)                                               # (B, 3H)

        # PyTorch gate order: r, z, n  (static lane slices of the fused gates)
        r = jax.nn.sigmoid(gi[:, 0:H] + gh[:, 0:H])
        z = jax.nn.sigmoid(gi[:, H:2 * H] + gh[:, H:2 * H])
        n = jnp.tanh(gi[:, 2 * H:3 * H] + r * gh[:, 2 * H:3 * H])
        h_new = (1.0 - z) * n + z * h_prev                          # (B, H)

        h_scr[...] = h_new
        out_ref[t] = h_new                                          # step t

    hn_ref[...] = h_scr[...][None, :, :]


def encoder_rnn_forward(ids, emb, w_ih, w_hh, b_ih, b_hh):
    """ids: (B, T) int32 -> (output (B, T, H), hidden (1, B, H))."""
    B, T = ids.shape
    V, H = emb.shape

    # Pack gates along lanes: (3, H, H) -> (H, 3H); (3, 1, H) -> (1, 3H).
    w_ih_cat = jnp.concatenate([w_ih[0], w_ih[1], w_ih[2]], axis=1)
    w_hh_cat = jnp.concatenate([w_hh[0], w_hh[1], w_hh[2]], axis=1)
    b_ih_cat = jnp.concatenate([b_ih[0], b_ih[1], b_ih[2]], axis=1)
    b_hh_cat = jnp.concatenate([b_hh[0], b_hh[1], b_hh[2]], axis=1)

    # Time-major flattened ids (T*B, 1) so in-kernel gather + input projection
    # are single hoisted matmuls.
    ids_tm = jnp.transpose(ids, (1, 0)).reshape(T * B, 1).astype(jnp.int32)

    out_tbh, h_n = pl.pallas_call(
        encoder_rnn_kernel,
        out_shape=(
            jax.ShapeDtypeStruct((T, B, H), jnp.float32),
            jax.ShapeDtypeStruct((1, B, H), jnp.float32),
        ),
        in_specs=[
            pl.BlockSpec(memory_space=pltpu.VMEM),   # ids (time-major, flat)
            pl.BlockSpec(memory_space=pltpu.VMEM),   # embedding table
            pl.BlockSpec(memory_space=pltpu.VMEM),   # w_ih (H, 3H)
            pl.BlockSpec(memory_space=pltpu.VMEM),   # w_hh (H, 3H)
            pl.BlockSpec(memory_space=pltpu.VMEM),   # b_ih (1, 3H)
            pl.BlockSpec(memory_space=pltpu.VMEM),   # b_hh (1, 3H)
        ],
        out_specs=(
            pl.BlockSpec(memory_space=pltpu.VMEM),
            pl.BlockSpec(memory_space=pltpu.VMEM),
        ),
        scratch_shapes=[
            pltpu.VMEM((T * B, 3 * H), jnp.float32),  # hoisted gi for all steps
            pltpu.VMEM((B, H), jnp.float32),          # running hidden state
        ],
    )(ids_tm, emb, w_ih_cat, w_hh_cat, b_ih_cat, b_hh_cat)

    output = jnp.transpose(out_tbh, (1, 0, 2))  # batch_first: (B, T, H)
    return output, h_n


def reference_forward(ids, emb, w_ih, w_hh, b_ih, b_hh):
    """Pure-JAX reference with identical semantics (for correctness check)."""
    x = emb[ids]                                  # (B, T, H)
    B, T, H = x.shape
    h = jnp.zeros((B, H), jnp.float32)

    def step(h, x_t):
        gi = jnp.einsum('bh,ghk->gbk', x_t, w_ih) + b_ih   # (3, B, H)
        gh = jnp.einsum('bh,ghk->gbk', h, w_hh) + b_hh
        r = jax.nn.sigmoid(gi[0] + gh[0])
        z = jax.nn.sigmoid(gi[1] + gh[1])
        n = jnp.tanh(gi[2] + r * gh[2])
        h_new = (1.0 - z) * n + z * h
        return h_new, h_new

    h_last, outs = lax.scan(step, h, jnp.transpose(x, (1, 0, 2)))
    return jnp.transpose(outs, (1, 0, 2)), h_last[None]


if __name__ == "__main__":
    # Small shapes consistent with the module: vocab=16, hidden=32, batch=2, seq=8.
    V, H, B, T = 16, 32, 2, 8

    key = jax.random.PRNGKey(0)
    k_ids, k_emb, k_wih, k_whh, k_bih, k_bhh = jax.random.split(key, 6)

    ids = jax.random.randint(k_ids, (B, T), 0, V, dtype=jnp.int32)

    # Deterministic parameter init (nn.Embedding ~ N(0,1); nn.GRU ~ U(-1/sqrt(H), 1/sqrt(H))).
    bound = 1.0 / jnp.sqrt(jnp.float32(H))
    emb = jax.random.normal(k_emb, (V, H), jnp.float32)
    w_ih = jax.random.uniform(k_wih, (3, H, H), jnp.float32, -bound, bound)
    w_hh = jax.random.uniform(k_whh, (3, H, H), jnp.float32, -bound, bound)
    b_ih = jax.random.uniform(k_bih, (3, 1, H), jnp.float32, -bound, bound)
    b_hh = jax.random.uniform(k_bhh, (3, 1, H), jnp.float32, -bound, bound)

    output, hidden = encoder_rnn_forward(ids, emb, w_ih, w_hh, b_ih, b_hh)
    jax.block_until_ready((output, hidden))

    ref_out, ref_hid = reference_forward(ids, emb, w_ih, w_hh, b_ih, b_hh)
    assert output.shape == (B, T, H) and hidden.shape == (1, B, H)
    assert jnp.allclose(output, ref_out, atol=1e-5, rtol=1e-5)
    assert jnp.allclose(hidden, ref_hid, atol=1e-5, rtol=1e-5)

    print("KERNEL_OK")
</pallas_src>

<mosaic_0001>
module attributes {stable_mosaic.version = 11 : i64} {
  func.func @encoder_rnn_kernel(%arg0: memref<16x1xi32, #tpu.memory_space<vmem>>, %arg1: memref<16x32xf32, #tpu.memory_space<vmem>>, %arg2: memref<32x96xf32, #tpu.memory_space<vmem>>, %arg3: memref<32x96xf32, #tpu.memory_space<vmem>>, %arg4: memref<1x96xf32, #tpu.memory_space<vmem>>, %arg5: memref<1x96xf32, #tpu.memory_space<vmem>>, %arg6: memref<8x2x32xf32, #tpu.memory_space<vmem>>, %arg7: memref<1x2x32xf32, #tpu.memory_space<vmem>>, %arg8: memref<16x96xf32, #tpu.memory_space<vmem>>, %arg9: memref<2x32xf32, #tpu.memory_space<vmem>>) attributes {dimension_semantics = [], scalar_prefetch = 0 : i64, scratch_operands = 2 : i64, tpu.core_type = #tpu.core_type<tc>} {
    %c0 = arith.constant 0 : index
    %c0_0 = arith.constant 0 : index
    %0 = vector.load %arg0[%c0, %c0_0] : memref<16x1xi32, #tpu.memory_space<vmem>>, vector<16x1xi32>
    %1 = tpu.iota {dimensions = array<i32: 1>} : vector<16x16xi32>
    %2 = vector.broadcast %0 : vector<16x1xi32> to vector<16x16xi32>
    %3 = arith.cmpi eq, %2, %1 : vector<16x16xi32>
    %4 = arith.extui %3 : vector<16x16xi1> to vector<16x16xi32>
    %5 = arith.sitofp %4 : vector<16x16xi32> to vector<16x16xf32>
    %c0_1 = arith.constant 0 : index
    %c0_2 = arith.constant 0 : index
    %6 = vector.load %arg1[%c0_1, %c0_2] : memref<16x32xf32, #tpu.memory_space<vmem>>, vector<16x32xf32>
    %cst = arith.constant dense<0.000000e+00> : vector<16x32xf32>
    %7 = tpu.matmul %5, %6, %cst {dimension_numbers = #tpu.dot_dimension_numbers<[1], [0], [0], [1], [0, 0, 1, 1], [], []>} : vector<16x16xf32>, vector<16x32xf32>, vector<16x32xf32> -> vector<16x32xf32>
    %c0_3 = arith.constant 0 : index
    %c0_4 = arith.constant 0 : index
    %8 = vector.load %arg2[%c0_3, %c0_4] : memref<32x96xf32, #tpu.memory_space<vmem>>, vector<32x96xf32>
    %cst_5 = arith.constant dense<0.000000e+00> : vector<16x96xf32>
    %9 = tpu.matmul %7, %8, %cst_5 {dimension_numbers = #tpu.dot_dimension_numbers<[1], [0], [0], [1], [0, 0, 1, 1], [], []>} : vector<16x32xf32>, vector<32x96xf32>, vector<16x96xf32> -> vector<16x96xf32>
    %c0_6 = arith.constant 0 : index
    %c0_7 = arith.constant 0 : index
    %10 = vector.load %arg4[%c0_6, %c0_7] : memref<1x96xf32, #tpu.memory_space<vmem>>, vector<1x96xf32>
    %11 = vector.broadcast %10 : vector<1x96xf32> to vector<16x96xf32>
    %12 = arith.addf %9, %11 : vector<16x96xf32>
    %c0_8 = arith.constant 0 : index
    %c0_9 = arith.constant 0 : index
    %13 = vector.load %arg8[%c0_8, %c0_9] : memref<16x96xf32, #tpu.memory_space<vmem>>, vector<16x96xf32>
    tpu.vector_store %arg8[%c0_8, %c0_9], %12 {strides = array<i32>} : memref<16x96xf32, #tpu.memory_space<vmem>>, vector<16x96xf32>,
    %c0_10 = arith.constant 0 : index
    %c0_11 = arith.constant 0 : index
    %14 = vector.load %arg3[%c0_10, %c0_11] : memref<32x96xf32, #tpu.memory_space<vmem>>, vector<32x96xf32>
    %c0_12 = arith.constant 0 : index
    %c0_13 = arith.constant 0 : index
    %15 = vector.load %arg5[%c0_12, %c0_13] : memref<1x96xf32, #tpu.memory_space<vmem>>, vector<1x96xf32>
    %cst_14 = arith.constant 0.000000e+00 : f32
    %16 = vector.broadcast %cst_14 : f32 to vector<2x32xf32>
    %c0_15 = arith.constant 0 : index
    %c0_16 = arith.constant 0 : index
    %17 = vector.load %arg9[%c0_15, %c0_16] : memref<2x32xf32, #tpu.memory_space<vmem>>, vector<2x32xf32>
    tpu.vector_store %arg9[%c0_15, %c0_16], %16 {strides = array<i32>} : memref<2x32xf32, #tpu.memory_space<vmem>>, vector<2x32xf32>,
    %c0_i32 = arith.constant 0 : i32
    %c8_i32 = arith.constant 8 : i32
    %18 = arith.addi %c0_i32, %c8_i32 : i32
    %c1_i32 = arith.constant 1 : i32
    scf.for %arg10 = %c0_i32 to %18 step %c1_i32  : i32 {
      %c1_i32_23 = arith.constant 1 : i32
      %22 = arith.muli %arg10, %c1_i32_23 : i32
      %c0_i32_24 = arith.constant 0 : i32
      %23 = arith.addi %c0_i32_24, %22 : i32
      %c0_25 = arith.constant 0 : index
      %c0_26 = arith.constant 0 : index
      %24 = vector.load %arg9[%c0_25, %c0_26] : memref<2x32xf32, #tpu.memory_space<vmem>>, vector<2x32xf32>
      %c2_i32 = arith.constant 2 : i32
      %25 = arith.muli %23, %c2_i32 : i32
      %26 = arith.index_cast %25 : i32 to index
      %c0_27 = arith.constant 0 : index
      %27 = vector.load %arg8[%26, %c0_27] : memref<16x96xf32, #tpu.memory_space<vmem>>, vector<2x96xf32>
      %cst_28 = arith.constant dense<0.000000e+00> : vector<2x96xf32>
      %28 = tpu.matmul %24, %14, %cst_28 {dimension_numbers = #tpu.dot_dimension_numbers<[1], [0], [0], [1], [0, 0, 1, 1], [], []>} : vector<2x32xf32>, vector<32x96xf32>, vector<2x96xf32> -> vector<2x96xf32>
      %29 = vector.broadcast %15 : vector<1x96xf32> to vector<2x96xf32>
      %30 = arith.addf %28, %29 : vector<2x96xf32>
      %31 = vector.extract_strided_slice %27 {offsets = [0, 0], sizes = [2, 32], strides = [1, 1]} : vector<2x96xf32> to vector<2x32xf32>
      %32 = vector.extract_strided_slice %30 {offsets = [0, 0], sizes = [2, 32], strides = [1, 1]} : vector<2x96xf32> to vector<2x32xf32>
      %33 = arith.addf %31, %32 : vector<2x32xf32>
      %34 = arith.negf %33 : vector<2x32xf32>
      %35 = math.exp %34 : vector<2x32xf32>
      %cst_29 = arith.constant 1.000000e+00 : f32
      %36 = vector.broadcast %cst_29 : f32 to vector<2x32xf32>
      %37 = arith.addf %36, %35 : vector<2x32xf32>
      %38 = arith.divf %36, %37 : vector<2x32xf32>
      %39 = vector.extract_strided_slice %27 {offsets = [0, 32], sizes = [2, 32], strides = [1, 1]} : vector<2x96xf32> to vector<2x32xf32>
      %40 = vector.extract_strided_slice %30 {offsets = [0, 32], sizes = [2, 32], strides = [1, 1]} : vector<2x96xf32> to vector<2x32xf32>
      %41 = arith.addf %39, %40 : vector<2x32xf32>
      %42 = arith.negf %41 : vector<2x32xf32>
      %43 = math.exp %42 : vector<2x32xf32>
      %cst_30 = arith.constant 1.000000e+00 : f32
      %44 = vector.broadcast %cst_30 : f32 to vector<2x32xf32>
      %45 = arith.addf %44, %43 : vector<2x32xf32>
      %46 = arith.divf %44, %45 : vector<2x32xf32>
      %47 = vector.extract_strided_slice %27 {offsets = [0, 64], sizes = [2, 32], strides = [1, 1]} : vector<2x96xf32> to vector<2x32xf32>
      %48 = vector.extract_strided_slice %30 {offsets = [0, 64], sizes = [2, 32], strides = [1, 1]} : vector<2x96xf32> to vector<2x32xf32>
      %49 = arith.mulf %38, %48 : vector<2x32xf32>
      %50 = arith.addf %47, %49 : vector<2x32xf32>
      %51 = math.tanh %50 : vector<2x32xf32>
      %cst_31 = arith.constant 1.000000e+00 : f32
      %52 = vector.broadcast %cst_31 : f32 to vector<2x32xf32>
      %53 = arith.subf %52, %46 : vector<2x32xf32>
      %54 = arith.mulf %53, %51 : vector<2x32xf32>
      %55 = arith.mulf %46, %24 : vector<2x32xf32>
      %56 = arith.addf %54, %55 : vector<2x32xf32>
      %c0_32 = arith.constant 0 : index
      %c0_33 = arith.constant 0 : index
      %57 = vector.load %arg9[%c0_32, %c0_33] : memref<2x32xf32, #tpu.memory_space<vmem>>, vector<2x32xf32>
      tpu.vector_store %arg9[%c0_32, %c0_33], %56 {strides = array<i32>} : memref<2x32xf32, #tpu.memory_space<vmem>>, vector<2x32xf32>,
      %58 = arith.index_cast %23 : i32 to index
      %c0_34 = arith.constant 0 : index
      %c0_35 = arith.constant 0 : index
      %59 = vector.load %arg6[%58, %c0_34, %c0_35] : memref<8x2x32xf32, #tpu.memory_space<vmem>>, vector<1x2x32xf32>
      %60 = vector.shape_cast %59 : vector<1x2x32xf32> to vector<2x32xf32>
      %61 = vector.shape_cast %56 : vector<2x32xf32> to vector<1x2x32xf32>
      tpu.vector_store %arg6[%58, %c0_34, %c0_35], %61 {strides = array<i32>} : memref<8x2x32xf32, #tpu.memory_space<vmem>>, vector<1x2x32xf32>,
    }
    %c8_i32_17 = arith.constant 8 : i32
    %c0_18 = arith.constant 0 : index
    %c0_19 = arith.constant 0 : index
    %19 = vector.load %arg9[%c0_18, %c0_19] : memref<2x32xf32, #tpu.memory_space<vmem>>, vector<2x32xf32>
    %20 = vector.shape_cast %19 : vector<2x32xf32> to vector<1x2x32xf32>
    %c0_20 = arith.constant 0 : index
    %c0_21 = arith.constant 0 : index
    %c0_22 = arith.constant 0 : index
    %21 = vector.load %arg7[%c0_20, %c0_21, %c0_22] : memref<1x2x32xf32, #tpu.memory_space<vmem>>, vector<1x2x32xf32>
    tpu.vector_store %arg7[%c0_20, %c0_21, %c0_22], %20 {strides = array<i32>} : memref<1x2x32xf32, #tpu.memory_space<vmem>>, vector<1x2x32xf32>,
    return
  }
}

</mosaic_0001>

<llo_original>
// kernel: tpu_custom_call.1
$region0: #{tpu_custom_call.1}
  #allocation0 [shape = 'u32[]', space=smem, size = 0x4, offset = 0x4, fixed_abs, tag = 'smem constant byte address 0x4 - core index']
  #allocation1 [shape = 'u32[144,128]{1,0:T(1,128)}', space=vmem, size = 0x12000, scoped, tag = 'internal scratch']
  #allocation2 [shape = 'f32[16,96]{1,0:T(8,128)}', space=vmem, size = 0x2000, scoped, tag = 'scratch operand']
  #allocation3 [shape = 'f32[2,32]{1,0:T(2,128)}', space=vmem, size = 0x400, scoped, tag = 'scratch operand']
  %s0 = inlined_call_operand.vmem [shape: s32[16,1], index: 0, kind: input, shape index: {}]
  %s1 = inlined_call_operand.vmem [shape: f32[16,32], index: 1, kind: input, shape index: {}]
  %s2 = inlined_call_operand.hbm [shape: f32[32,96], index: 2, kind: input, shape index: {}]
  %s3 = inlined_call_operand.hbm [shape: f32[32,96], index: 3, kind: input, shape index: {}]
  %s4 = inlined_call_operand.vmem [shape: f32[1,96], index: 4, kind: input, shape index: {}]
  %s5 = inlined_call_operand.vmem [shape: f32[1,96], index: 5, kind: input, shape index: {}]
  %s6 = inlined_call_operand.hbm [shape: f32[8,2,32], index: 6, kind: output, shape index: {0}]
  %s7 = inlined_call_operand.hbm [shape: f32[1,2,32], index: 7, kind: output, shape index: {1}]
  %8 = xla_tuple %s6, %s7
  %s9 = sld [smem:[#allocation0]]
  $region57: #{tpu_custom_call.1} parent=0
    _
  %s11 = ssub.s32 1, %s9
  %s12 = scalar_select 0, %s11, %s9
  $region1: #{tpu_custom_call.1} parent=0
    #allocation4 [shape = 'u8[16384]{0}', space=vmem, size = 0x4000, scoped, tag = 'input window, operand 2, single buffered']
    #allocation5 [shape = 's32[1]{0}', space=sflag, size = 0x4, scoped, tag = 'scoped memory for tpu_custom_call.1']
    #allocation6 [shape = 's32[1]{0}', space=sflag, size = 0x4, scoped, tag = 'scoped memory for tpu_custom_call.1']
    #allocation7 [shape = 'u8[16384]{0}', space=vmem, size = 0x4000, scoped, tag = 'input window, operand 3, single buffered']
    #allocation8 [shape = 's32[1]{0}', space=sflag, size = 0x4, scoped, tag = 'scoped memory for tpu_custom_call.1']
    #allocation9 [shape = 'u8[8192]{0}', space=vmem, size = 0x2000, scoped, tag = 'output window, operand 0, single buffered']
    #allocation10 [shape = 'u8[1024]{0}', space=vmem, size = 0x400, scoped, tag = 'output window, operand 1, single buffered']
    #allocation11 [shape = 's32[1]{0}', space=sflag, size = 0x4, scoped, tag = 'scoped memory for tpu_custom_call.1']
    %13 = vsyncpa [#allocation5], 0
    %14 = vsyncpa [#allocation8], 0
    %15 = vsyncpa [#allocation6], 0
    %16 = vsyncpa [#allocation11], 0
    // Predicated region
    $region2: #{tpu_custom_call.1} parent=1 // pred_check
      _
    $region3: #{tpu_custom_call.1} parent=1 // pred_check_branch
      %18 = sbr.rel (0) target = $region5
    $region4: #{tpu_custom_call.1} parent=1 // pred_region
      _
    $region5: #{tpu_custom_call.1} parent=1 // pred_fallthru
      _
    // Predicated region
    $region6: #{tpu_custom_call.1} parent=1 // pred_check
      _
    $region7: #{tpu_custom_call.1} parent=1 // pred_check_branch
      %20 = sbr.rel (0) target = $region9
    $region8: #{tpu_custom_call.1} parent=1 // pred_region
      _
    $region9: #{tpu_custom_call.1} parent=1 // pred_fallthru
      _
    // Predicated region
    $region10: #{tpu_custom_call.1} parent=1 // pred_check
      _
    $region11: #{tpu_custom_call.1} parent=1 // pred_check_branch
      %22 = sbr.rel (0) target = $region13
    $region12: #{tpu_custom_call.1} parent=1 // pred_region
      %s24 = ssub.s32 512, 512
      %25 = vsyncadd [#allocation5], %s24
      %s26 = sshll.u32 [#allocation4], 4
      %s27 = int_to_ptr.vmem [resolvable:$true] %s26
      %32 = dma.hbm_to_vmem [thread:$0]  %s2, 512, %s27, [#allocation5], 128, 128, 8
    $region13: #{tpu_custom_call.1} parent=1 // pred_fallthru
      _
    // Predicated region
    $region14: #{tpu_custom_call.1} parent=1 // pred_check
      _
    $region15: #{tpu_custom_call.1} parent=1 // pred_check_branch
      %34 = sbr.rel (0) target = $region17
    $region16: #{tpu_custom_call.1} parent=1 // pred_region
      %s36 = ssub.s32 512, 512
      %37 = vsyncadd [#allocation8], %s36
      %s38 = sshll.u32 [#allocation7], 4
      %s39 = int_to_ptr.vmem [resolvable:$true] %s38
      %44 = dma.hbm_to_vmem [thread:$0]  %s3, 512, %s39, [#allocation8], 128, 128, 8
    $region17: #{tpu_custom_call.1} parent=1 // pred_fallthru
      _
    // Predicated region
    $region18: #{tpu_custom_call.1} parent=1 // pred_check
      _
    $region19: #{tpu_custom_call.1} parent=1 // pred_check_branch
      %46 = sbr.rel (0) target = $region21
    $region20: #{tpu_custom_call.1} parent=1 // pred_region
      _
    $region21: #{tpu_custom_call.1} parent=1 // pred_fallthru
      _
    // Predicated region
    $region22: #{tpu_custom_call.1} parent=1 // pred_check
      _
    $region23: #{tpu_custom_call.1} parent=1 // pred_check_branch
      %48 = sbr.rel (0) target = $region25
    $region24: #{tpu_custom_call.1} parent=1 // pred_region
      _
    $region25: #{tpu_custom_call.1} parent=1 // pred_fallthru
      _
    // Predicated region
    $region26: #{tpu_custom_call.1} parent=1 // pred_check
      _
    $region27: #{tpu_custom_call.1} parent=1 // pred_check_branch
      %50 = sbr.rel (0) target = $region29
    $region28: #{tpu_custom_call.1} parent=1 // pred_region
      %51 = dma.done [#allocation5], 512
    $region29: #{tpu_custom_call.1} parent=1 // pred_fallthru
      _
    // Predicated region
    $region30: #{tpu_custom_call.1} parent=1 // pred_check
      _
    $region31: #{tpu_custom_call.1} parent=1 // pred_check_branch
      %53 = sbr.rel (0) target = $region33
    $region32: #{tpu_custom_call.1} parent=1 // pred_region
      %54 = dma.done [#allocation8], 512
    $region33: #{tpu_custom_call.1} parent=1 // pred_fallthru
      _
    %v55 = vld [vmem:[%s0] sm:$0xff]
    %v56 = vld [vmem:[%s0 + $0x8] sm:$0xff]
    %v57 = vlaneseq
    %v58 = vand.u32 %v57, 127
    %59 = vset.pattern.permute.xlu0 0
    %60 = vperm.xlu0 %59, %v55
    %v61 = vpop.permute.xlu0 %60
    %62 = vset.pattern.permute.xlu0 0
    %63 = vperm.xlu0 %62, %v56
    %v64 = vpop.permute.xlu0 %63
    %vm65 = vcmp.eq.s32.totalorder %v61, %v58
    %vm66 = vcmp.eq.s32.totalorder %v64, %v58
    %v67 = vsel %vm65, 1, 0
    %v68 = vsel %vm66, 1, 0
    %v69 = vcvt.s32.f32 %v67
    %v70 = vcvt.s32.f32 %v68
    %v71 = vld [vmem:[%s1] sm:$0xff]
    %v72 = vld [vmem:[%s1 + $0x8] sm:$0xff]
    %vm73 = vcmask 130048
    %v75 = vsel %vm73, %v69, 0
    %v78 = vsel %vm73, %v70, 0
    %80 = vmatprep.subr.mxu0 0.0
    %81 = vmatpush1.msra.mxu0 %v71
    %82 = vmatprep.subr.mxu0 0.0
    %83 = vmatpush1.msra.mxu0 %v72
    %84 = vmatprep.subr.mxu0 0.0
    %85 = vmatpush1.msra.mxu0 0.0
    %86 = vmatprep.subr.mxu0 0.0
    %87 = vmatpush1.msra.mxu0 0.0
    %88 = vmatprep.subr.mxu0 0.0
    %89 = vmatpush1.msra.mxu0 0.0
    %90 = vmatprep.subr.mxu0 0.0
    %91 = vmatpush1.msra.mxu0 0.0
    %92 = vmatprep.subr.mxu0 0.0
    %93 = vmatpush1.msra.mxu0 0.0
    %94 = vmatprep.subr.mxu0 0.0
    %95 = vmatpush1.msra.mxu0 0.0
    %96 = vmatprep.subr.mxu0 0.0
    %97 = vmatpush1.msra.mxu0 0.0
    %98 = vmatprep.subr.mxu0 0.0
    %99 = vmatpush1.msra.mxu0 0.0
    %100 = vmatprep.subr.mxu0 0.0
    %101 = vmatpush1.msra.mxu0 0.0
    %102 = vmatprep.subr.mxu0 0.0
    %103 = vmatpush1.msra.mxu0 0.0
    %104 = vmatprep.subr.mxu0 0.0
    %105 = vmatpush1.msra.mxu0 0.0
    %106 = vmatprep.subr.mxu0 0.0
    %107 = vmatpush1.msra.mxu0 0.0
    %108 = vmatprep.subr.mxu0 0.0
    %109 = vmatpush1.msra.mxu0 0.0
    %110 = vmatprep.subr.mxu0 0.0
    %111 = vmatpush1.msra.mxu0 0.0
    %112 = vmatprep.subr.mxu0 0.0
    %113 = vmatpush1.msra.mxu0 0.0
    %114 = vmatprep.subr.mxu0 0.0
    %115 = vmatpush1.msra.mxu0 0.0
    %116 = vmatprep.subr.mxu0 0.0
    %117 = vmatpush1.msra.mxu0 0.0
    %118 = vmatprep.subr.mxu0 0.0
    %119 = vmatpush1.msra.mxu0 0.0
    %120 = vmatprep.subr.mxu0 0.0
    %121 = vmatpush1.msra.mxu0 0.0
    %122 = vmatprep.subr.mxu0 0.0
    %123 = vmatpush1.msra.mxu0 0.0
    %124 = vmatprep.subr.mxu0 0.0
    %125 = vmatpush1.msra.mxu0 0.0
    %126 = vmatprep.subr.mxu0 0.0
    %127 = vmatpush1.msra.mxu0 0.0
    %128 = vmatprep.subr.mxu0 0.0
    %129 = vmatpush1.msra.mxu0 0.0
    %130 = vmatprep.subr.mxu0 0.0
    %131 = vmatpush1.msra.mxu0 0.0
    %132 = vmatprep.subr.mxu0 0.0
    %133 = vmatpush1.msra.mxu0 0.0
    %134 = vmatprep.subr.mxu0 0.0
    %135 = vmatpush1.msra.mxu0 0.0
    %136 = vmatprep.subr.mxu0 0.0
    %137 = vmatpush1.msra.mxu0 0.0
    %138 = vmatprep.subr.mxu0 0.0
    %139 = vmatpush1.msra.mxu0 0.0
    %140 = vmatprep.subr.mxu0 0.0
    %141 = vmatpush1.msra.mxu0 0.0
    %142 = vmatprep.subr.mxu0 0.0
    %143 = vmatpush1.msra.mxu0 0.0
    %144 = vmatprep.mubr.f32.mxu0 0.0
    %145 = vmatmul.mubr.f32.gmra.mrb[0].mxu0 %v75
    %v146 = vpop.f32.mrb[0].mxu0
    %v147 = vadd.f32 0.0, %v146
    %v148 = vpop.f32.mrb[0].mxu0
    %149 = vmatprep.mubr.f32.mxu0 0.0
    %150 = vmatmul.mubr.f32.gmra.mrb[0].mxu0 %v78
    %v151 = vpop.f32.mrb[0].mxu0
    %v152 = vadd.f32 0.0, %v151
    %v153 = vpop.f32.mrb[0].mxu0
    %154 = vdwg.mxu0
    %v155 = vld [vmem:[#allocation4] sm:$0xff]
    %v156 = vld [vmem:[#allocation4 + $0x8] sm:$0xff]
    %v157 = vld [vmem:[#allocation4 + $0x10] sm:$0xff]
    %v158 = vld [vmem:[#allocation4 + $0x18] sm:$0xff]
    %v159 = vld [vmem:[%s4] sm:$0x1]
    %v161 = vlaneseq
    %v162 = vshrl.u32 %v161, 7
    %v163 = vsub.s32 0, %v162
    %v164 = vrot.slane %v159, %v163
    %vm166 = vcmask 261120
    %v168 = vsel %vm166, %v147, 0
    %v171 = vsel %vm166, %v152, 0
    %173 = vmatprep.subr.mxu0 0.0
    %174 = vmatpush1.msra.mxu0 %v155
    %175 = vmatprep.subr.mxu0 0.0
    %176 = vmatpush1.msra.mxu0 %v156
    %177 = vmatprep.subr.mxu0 0.0
    %178 = vmatpush1.msra.mxu0 %v157
    %179 = vmatprep.subr.mxu0 0.0
    %180 = vmatpush1.msra.mxu0 %v158
    %181 = vmatprep.subr.mxu0 0.0
    %182 = vmatpush1.msra.mxu0 0.0
    %183 = vmatprep.subr.mxu0 0.0
    %184 = vmatpush1.msra.mxu0 0.0
    %185 = vmatprep.subr.mxu0 0.0
    %186 = vmatpush1.msra.mxu0 0.0
    %187 = vmatprep.subr.mxu0 0.0
    %188 = vmatpush1.msra.mxu0 0.0
    %189 = vmatprep.subr.mxu0 0.0
    %190 = vmatpush1.msra.mxu0 0.0
    %191 = vmatprep.subr.mxu0 0.0
    %192 = vmatpush1.msra.mxu0 0.0
    %193 = vmatprep.subr.mxu0 0.0
    %194 = vmatpush1.msra.mxu0 0.0
    %195 = vmatprep.subr.mxu0 0.0
    %196 = vmatpush1.msra.mxu0 0.0
    %197 = vmatprep.subr.mxu0 0.0
    %198 = vmatpush1.msra.mxu0 0.0
    %199 = vmatprep.subr.mxu0 0.0
    %200 = vmatpush1.msra.mxu0 0.0
    %201 = vmatprep.subr.mxu0 0.0
    %202 = vmatpush1.msra.mxu0 0.0
    %203 = vmatprep.subr.mxu0 0.0
    %204 = vmatpush1.msra.mxu0 0.0
    %205 = vmatprep.subr.mxu0 0.0
    %206 = vmatpush1.msra.mxu0 0.0
    %207 = vmatprep.subr.mxu0 0.0
    %208 = vmatpush1.msra.mxu0 0.0
    %209 = vmatprep.subr.mxu0 0.0
    %210 = vmatpush1.msra.mxu0 0.0
    %211 = vmatprep.subr.mxu0 0.0
    %212 = vmatpush1.msra.mxu0 0.0
    %213 = vmatprep.subr.mxu0 0.0
    %214 = vmatpush1.msra.mxu0 0.0
    %215 = vmatprep.subr.mxu0 0.0
    %216 = vmatpush1.msra.mxu0 0.0
    %217 = vmatprep.subr.mxu0 0.0
    %218 = vmatpush1.msra.mxu0 0.0
    %219 = vmatprep.subr.mxu0 0.0
    %220 = vmatpush1.msra.mxu0 0.0
    %221 = vmatprep.subr.mxu0 0.0
    %222 = vmatpush1.msra.mxu0 0.0
    %223 = vmatprep.subr.mxu0 0.0
    %224 = vmatpush1.msra.mxu0 0.0
    %225 = vmatprep.subr.mxu0 0.0
    %226 = vmatpush1.msra.mxu0 0.0
    %227 = vmatprep.subr.mxu0 0.0
    %228 = vmatpush1.msra.mxu0 0.0
    %229 = vmatprep.subr.mxu0 0.0
    %230 = vmatpush1.msra.mxu0 0.0
    %231 = vmatprep.subr.mxu0 0.0
    %232 = vmatpush1.msra.mxu0 0.0
    %233 = vmatprep.subr.mxu0 0.0
    %234 = vmatpush1.msra.mxu0 0.0
    %235 = vmatprep.subr.mxu0 0.0
    %236 = vmatpush1.msra.mxu0 0.0
    %237 = vmatprep.mubr.f32.mxu0 0.0
    %238 = vmatmul.mubr.f32.gmra.mrb[0].mxu0 %v168
    %v239 = vpop.f32.mrb[0].mxu0
    %v240 = vadd.f32 %v164, %v239
    %v241 = vpop.f32.mrb[0].mxu0
    %242 = vmatprep.mubr.f32.mxu0 0.0
    %243 = vmatmul.mubr.f32.gmra.mrb[0].mxu0 %v171
    %v244 = vpop.f32.mrb[0].mxu0
    %v245 = vadd.f32 %v164, %v244
    %v246 = vpop.f32.mrb[0].mxu0
    %247 = vdwg.mxu0
    %vm248 = vcmask 785408
    %249 = vst.msk [vmem:[#allocation2] sm:$0xff] %vm248, %v240
    %250 = vst.msk [vmem:[#allocation2 + $0x8] sm:$0xff] %vm248, %v245
    %v251 = vld [vmem:[#allocation7] sm:$0xff]
    %v252 = vld [vmem:[#allocation7 + $0x8] sm:$0xff]
    %v253 = vld [vmem:[#allocation7 + $0x10] sm:$0xff]
    %v254 = vld [vmem:[#allocation7 + $0x18] sm:$0xff]
    %v255 = vld [vmem:[%s5] sm:$0x1]
    %vm256 = vcmask 254976
    %257 = vst.msk [vmem:[#allocation3] sm:$0x3] %vm256, 0.0
    loop: start=0, step=1, limit=8
    $region34: #{tpu_custom_call.1} parent=1 // loop_pre_header
      _
    $region35: #{tpu_custom_call.1} parent=1 // loop_header
      %s259 = sphi 0, %s263
      %p260 = scmp.ge.s32.totalorder %s259, 8
    $region36: #{tpu_custom_call.1} parent=1 // loop_header_branch
      %262 = sbr.rel (%p260) target = $region40
    $region37: #{tpu_custom_call.1} parent=1 // loop_body
      %v264 = vld [vmem:[#allocation3] sm:$0x3]
      %s265 = smul.u32 %s259, 2
      %s266 = scalar_lea.vmem [#allocation2], %s265
      %v267 = vld [vmem:[%s266] sm:$0x3]
      %v269 = vlaneseq
      %v270 = vshrl.u32 %v269, 7
      %v271 = vsub.s32 0, %v270
      %v272 = vrot.slane %v255, %v271
      %v275 = vsel %vm166, %v264, 0
      %277 = vmatprep.subr.mxu0 0.0
      %278 = vmatpush1.msra.mxu0 %v251
      %279 = vmatprep.subr.mxu0 0.0
      %280 = vmatpush1.msra.mxu0 %v252
      %281 = vmatprep.subr.mxu0 0.0
      %282 = vmatpush1.msra.mxu0 %v253
      %283 = vmatprep.subr.mxu0 0.0
      %284 = vmatpush1.msra.mxu0 %v254
      %285 = vmatprep.subr.mxu0 0.0
      %286 = vmatpush1.msra.mxu0 0.0
      %287 = vmatprep.subr.mxu0 0.0
      %288 = vmatpush1.msra.mxu0 0.0
      %289 = vmatprep.subr.mxu0 0.0
      %290 = vmatpush1.msra.mxu0 0.0
      %291 = vmatprep.subr.mxu0 0.0
      %292 = vmatpush1.msra.mxu0 0.0
      %293 = vmatprep.subr.mxu0 0.0
      %294 = vmatpush1.msra.mxu0 0.0
      %295 = vmatprep.subr.mxu0 0.0
      %296 = vmatpush1.msra.mxu0 0.0
      %297 = vmatprep.subr.mxu0 0.0
      %298 = vmatpush1.msra.mxu0 0.0
      %299 = vmatprep.subr.mxu0 0.0
      %300 = vmatpush1.msra.mxu0 0.0
      %301 = vmatprep.subr.mxu0 0.0
      %302 = vmatpush1.msra.mxu0 0.0
      %303 = vmatprep.subr.mxu0 0.0
      %304 = vmatpush1.msra.mxu0 0.0
      %305 = vmatprep.subr.mxu0 0.0
      %306 = vmatpush1.msra.mxu0 0.0
      %307 = vmatprep.subr.mxu0 0.0
      %308 = vmatpush1.msra.mxu0 0.0
      %309 = vmatprep.subr.mxu0 0.0
      %310 = vmatpush1.msra.mxu0 0.0
      %311 = vmatprep.subr.mxu0 0.0
      %312 = vmatpush1.msra.mxu0 0.0
      %313 = vmatprep.subr.mxu0 0.0
      %314 = vmatpush1.msra.mxu0 0.0
      %315 = vmatprep.subr.mxu0 0.0
      %316 = vmatpush1.msra.mxu0 0.0
      %317 = vmatprep.subr.mxu0 0.0
      %318 = vmatpush1.msra.mxu0 0.0
      %319 = vmatprep.subr.mxu0 0.0
      %320 = vmatpush1.msra.mxu0 0.0
      %321 = vmatprep.subr.mxu0 0.0
      %322 = vmatpush1.msra.mxu0 0.0
      %323 = vmatprep.subr.mxu0 0.0
      %324 = vmatpush1.msra.mxu0 0.0
      %325 = vmatprep.subr.mxu0 0.0
      %326 = vmatpush1.msra.mxu0 0.0
      %327 = vmatprep.subr.mxu0 0.0
      %328 = vmatpush1.msra.mxu0 0.0
      %329 = vmatprep.subr.mxu0 0.0
      %330 = vmatpush1.msra.mxu0 0.0
      %331 = vmatprep.subr.mxu0 0.0
      %332 = vmatpush1.msra.mxu0 0.0
      %333 = vmatprep.subr.mxu0 0.0
      %334 = vmatpush1.msra.mxu0 0.0
      %335 = vmatprep.subr.mxu0 0.0
      %336 = vmatpush1.msra.mxu0 0.0
      %337 = vmatprep.subr.mxu0 0.0
      %338 = vmatpush1.msra.mxu0 0.0
      %339 = vmatprep.subr.mxu0 0.0
      %340 = vmatpush1.msra.mxu0 0.0
      %341 = vmatprep.mubr.f32.mxu0 0.0
      %342 = vmatmul.mubr.f32.gmra.mrb[0].mxu0 %v275
      %v343 = vpop.f32.mrb[0].mxu0
      %v344 = vadd.f32 %v272, %v343
      %v345 = vpop.f32.mrb[0].mxu0
      %346 = vdwg.mxu0
      %v347 = vadd.f32 %v267, %v344
      %v348 = vxor.u32 %v347, 2147483648
      %v349 = vmul.f32 %v348, 1.442695
      %v350 = vpow.pop %v349
      %v351 = vadd.f32 %v350, 1.0
      %v352 = vrcp.pop %v351
      %v353 = vmul.f32 1.0, %v352
      %355 = vrot.lane.b32.xlu0 %v344, 64
      %v356 = vpop.permute.xlu0 %355
      %v358 = vmul.f32 %v353, %v356
      %360 = vrot.lane.b32.xlu0 %v358, 64
      %v361 = vpop.permute.xlu0 %360
      %v363 = vadd.f32 %v267, %v361
      %v364 = vtanh.pop %v363
      %v365 = vsub.f32 1.0, %v353
      %367 = vrot.lane.b32.xlu0 %v364, 96
      %v368 = vpop.permute.xlu0 %367
      %v370 = vmul.f32 %v365, %v368
      %371 = vrot.lane.b32.xlu0 %v264, 32
      %v372 = vpop.permute.xlu0 %371
      %v374 = vmul.f32 %v353, %v372
      %v375 = vadd.f32 %v370, %v374
      %377 = vrot.lane.b32.xlu0 %v375, 96
      %v378 = vpop.permute.xlu0 %377
      %380 = vst.msk [vmem:[#allocation3] sm:$0x3] %vm256, %v378
      %s381 = scalar_lea.vmem [#allocation9], %s265
      %382 = vst.msk [vmem:[%s381] sm:$0x3] %vm256, %v378
    $region38: #{tpu_custom_call.1} parent=1 // loop_footer
      %s263 = sadd.s32 1, %s259
    $region39: #{tpu_custom_call.1} parent=1 // loop_footer_branch
      %258 = sbr.rel target = $region35
    $region40: #{tpu_custom_call.1} parent=1 // loop_exit
      _
    %v383 = vld [vmem:[#allocation3] sm:$0x3]
    %384 = vst.msk [vmem:[#allocation10] sm:$0x3] %vm256, %v383
    // Predicated region
    $region41: #{tpu_custom_call.1} parent=1 // pred_check
      _
    $region42: #{tpu_custom_call.1} parent=1 // pred_check_branch
      %386 = sbr.rel (0) target = $region44
    $region43: #{tpu_custom_call.1} parent=1 // pred_region
      %s388 = ssub.s32 256, 256
      %389 = vsyncadd [#allocation6], %s388
      %s390 = sshll.u32 [#allocation9], 4
      %s391 = int_to_ptr.vmem [resolvable:$true] %s390
      %396 = dma.vmem_to_hbm [thread:$0]  %s391, 256, %s6, [#allocation6], 32, 32, 2
    $region44: #{tpu_custom_call.1} parent=1 // pred_fallthru
      _
    // Predicated region
    $region45: #{tpu_custom_call.1} parent=1 // pred_check
      _
    $region46: #{tpu_custom_call.1} parent=1 // pred_check_branch
      %398 = sbr.rel (0) target = $region48
    $region47: #{tpu_custom_call.1} parent=1 // pred_region
      %s400 = ssub.s32 32, 32
      %401 = vsyncadd [#allocation11], %s400
      %s403 = sshll.u32 [#allocation10], 4
      %s404 = int_to_ptr.vmem [resolvable:$true] %s403
      %406 = dma.vmem_to_hbm [thread:$0]  %s404, 32, %s7, [#allocation11]
    $region48: #{tpu_custom_call.1} parent=1 // pred_fallthru
      _
    // Predicated region
    $region49: #{tpu_custom_call.1} parent=1 // pred_check
      _
    $region50: #{tpu_custom_call.1} parent=1 // pred_check_branch
      %408 = sbr.rel (0) target = $region52
    $region51: #{tpu_custom_call.1} parent=1 // pred_region
      %409 = dma.done [#allocation6], 256
    $region52: #{tpu_custom_call.1} parent=1 // pred_fallthru
      _
    // Predicated region
    $region53: #{tpu_custom_call.1} parent=1 // pred_check
      _
    $region54: #{tpu_custom_call.1} parent=1 // pred_check_branch
      %411 = sbr.rel (0) target = $region56
    $region55: #{tpu_custom_call.1} parent=1 // pred_region
      %412 = dma.done [#allocation11], 32
    $region56: #{tpu_custom_call.1} parent=1 // pred_fallthru
      _
    %413 = vsyncpa [#allocation5], 1
    %414 = vsyncpa [#allocation8], 1
    %415 = vsyncpa [#allocation6], 1
    %416 = vsyncpa [#allocation11], 1

</llo_original>
